<compile_context>
chip_gen: v6e
topology: v6e:2x2x1
jax: 0.10.0
libtpu: 0.0.40
codegen_flags: <defaults>
</compile_context>

<pallas_src>
import numpy as np
import jax
import jax.numpy as jnp
from jax.experimental import pallas as pl
from jax.experimental.pallas import tpu as pltpu


def _mlp_conv_kernel(adj_ref, xrep_ref, w1_ref, b1_ref, w2_ref, b2_ref,
                     w3_ref, b3_ref, r_ref, out_ref):
    P, DIM = adj_ref.shape              # P = TM * N (target,source) pairs in this tile
    N, IN_OUT = xrep_ref.shape          # all source nodes, IN*OUT lanes
    TM = out_ref.shape[0]               # target-node tile

    # --- kernel MLP layer 1 (dim -> H) on the VPU ---------------------------
    # dim is tiny (2); a K=2 MXU matmul would waste the systolic array, so use
    # two broadcast FMAs and keep the MXU free for the w2/w3 matmuls below.
    h = adj_ref[:, 0:1] * w1_ref[0:1, :]
    for d in range(1, DIM):                               # static unroll (dim small)
        h = h + adj_ref[:, d:d + 1] * w1_ref[d:d + 1, :]
    h = jnp.maximum(h + b1_ref[...], 0.0)

    # --- layers 2 and 3 on the MXU ------------------------------------------
    h = jnp.dot(h, w2_ref[...], preferred_element_type=jnp.float32) + b2_ref[...]
    h = jnp.maximum(h, 0.0)
    K = jnp.dot(h, w3_ref[...], preferred_element_type=jnp.float32) + b3_ref[...]
    # K: [P, IN*OUT]; row p = t*N + j holds the row-major flattened (IN, OUT)
    # kernel matrix for source node j feeding local target node t.

    # --- per-pair message at full lane width --------------------------------
    # xrep[j, i*OUT + o] = x[j, i] (prepared once in the wrapper), so the
    # message is one 64-lane-wide elementwise multiply — no gather matmul,
    # no 8-lane sub-vreg slicing.
    prod = K.reshape(TM, N, IN_OUT) * xrep_ref[...][None, :, :]   # [TM, N, IN*OUT]

    # --- aggregate over source nodes j (XLU sublane reduction, overlaps MXU) -
    psum = jnp.sum(prod, axis=1)                                  # [TM, IN*OUT]

    # --- reduce over input features i via a tiny static block-identity matmul
    # r_ref is zero-padded to a lane-dense OUT_PAD so the store is an unmasked
    # full-width vst.
    out_ref[...] = jnp.dot(psum, r_ref[...],
                           preferred_element_type=jnp.float32)    # [TM, OUT_PAD]


def mlp_conv(adj, x, params, *, tile_targets=8, vmem_limit_bytes=48 * 1024 * 1024):
    """adj: [N, N, dim], x: [N, in_features] -> [N, out_features]."""
    w1, b1, w2, b2, w3, b3, root, bias = params
    N, N2, dim = adj.shape
    assert N == N2, "adj must be [N, N, dim]"
    in_f = x.shape[1]
    out_f = root.shape[1]
    assert w3.shape[1] == in_f * out_f

    TM = tile_targets
    assert N % TM == 0, "number of nodes must be a multiple of tile_targets"
    assert (TM * N) % 8 == 0, "adj tile sublane dim (TM*N) must be a multiple of 8"
    # NOTE: for real graph sizes sweep tile_targets (32/64/128, ...) against a
    # per-generation VMEM budget (~80-100 MiB v5e/v6e, ~40-48 MiB v7x) and keep
    # N // TM >= 2 so the "parallel" grid axis shards across v7x's 2 TensorCores.

    OUT_PAD = max(128, ((out_f + 127) // 128) * 128)   # lane-dense output slab

    adj_flat = adj.reshape(N * N, dim)                 # target-major, source-minor
    x_rep = jnp.repeat(x, out_f, axis=1)               # [N, IN*OUT]: xrep[j,i*OUT+o]=x[j,i]
    # static block-identity reduction matrix, zero-padded to OUT_PAD lanes
    r_mat = jnp.tile(jnp.eye(out_f, dtype=jnp.float32), (in_f, 1))       # [IN*OUT, OUT]
    r_mat = jnp.pad(r_mat, ((0, 0), (0, OUT_PAD - out_f)))               # [IN*OUT, OUT_PAD]

    b1r, b2r, b3r = b1.reshape(1, -1), b2.reshape(1, -1), b3.reshape(1, -1)

    def full(arr):
        return pl.BlockSpec(arr.shape, lambda t: (0,) * arr.ndim)

    grid_spec = pltpu.PrefetchScalarGridSpec(
        num_scalar_prefetch=0,
        grid=(N // TM,),
        in_specs=[
            pl.BlockSpec((TM * N, dim), lambda t: (t, 0)),   # adj rows of this target tile
            full(x_rep),                                     # replicated source features
            full(w1), full(b1r), full(w2), full(b2r),
            full(w3), full(b3r), full(r_mat),
        ],
        out_specs=pl.BlockSpec((TM, OUT_PAD), lambda t: (t, 0)),
    )

    agg = pl.pallas_call(
        _mlp_conv_kernel,
        out_shape=jax.ShapeDtypeStruct((N, OUT_PAD), jnp.float32),
        grid_spec=grid_spec,
        compiler_params=pltpu.CompilerParams(
            dimension_semantics=("parallel",),
            vmem_limit_bytes=vmem_limit_bytes),
    )(adj_flat, x_rep, w1, b1r, w2, b2r, w3, b3r, r_mat)

    # Root transform + bias epilogue: tiny [N,IN]x[IN,OUT] matmul, XLA fuses it
    # for free outside the kernel (and x no longer needs to be VMEM-resident).
    return agg[:, :out_f] + x @ root + bias


def mlp_conv_ref(adj, x, params):
    """Pure-JAX reference with identical semantics."""
    w1, b1, w2, b2, w3, b3, root, bias = params
    N, _, dim = adj.shape
    in_f, out_f = x.shape[1], root.shape[1]
    k = adj.reshape(N * N, dim)
    k = jax.nn.relu(k @ w1 + b1)
    k = jax.nn.relu(k @ w2 + b2)
    k = k @ w3 + b3                                   # [N*N, in*out]
    K = k.reshape(N, N, in_f, out_f)
    msg = jnp.einsum('ji,tjio->to', x, K)
    return msg + x @ root + bias


if __name__ == "__main__":
    # Small shapes: N=16 nodes, dim=2 pseudo-coords, in=8, out=8, hidden=32 (x2 layers)
    N, DIM, IN_F, OUT_F, H = 16, 2, 8, 8, 32

    key = jax.random.PRNGKey(0)
    ks = jax.random.split(key, 10)
    adj = jax.random.normal(ks[0], (N, N, DIM), jnp.float32)
    x = jax.random.normal(ks[1], (N, IN_F), jnp.float32)

    # Deterministic synthetic parameters (MLP: dim -> H -> H -> in*out, root, bias)
    w1 = jax.random.normal(ks[2], (DIM, H), jnp.float32) * 0.5
    b1 = jax.random.normal(ks[3], (H,), jnp.float32) * 0.1
    w2 = jax.random.normal(ks[4], (H, H), jnp.float32) * (1.0 / np.sqrt(H))
    b2 = jax.random.normal(ks[5], (H,), jnp.float32) * 0.1
    w3 = jax.random.normal(ks[6], (H, IN_F * OUT_F), jnp.float32) * (1.0 / np.sqrt(H))
    b3 = jax.random.normal(ks[7], (IN_F * OUT_F,), jnp.float32) * 0.1
    root = jax.random.normal(ks[8], (IN_F, OUT_F), jnp.float32) * (1.0 / np.sqrt(IN_F))
    bias = jax.random.normal(ks[9], (OUT_F,), jnp.float32) * 0.1
    params = (w1, b1, w2, b2, w3, b3, root, bias)

    out = mlp_conv(adj, x, params, tile_targets=8)   # grid = 2 (>= 2 for v7x megacore)
    jax.block_until_ready(out)

    ref = mlp_conv_ref(adj, x, params)
    np.testing.assert_allclose(np.asarray(out), np.asarray(ref), rtol=1e-4, atol=1e-4)
    print("KERNEL_OK")
</pallas_src>

<mosaic_0001>
module attributes {stable_mosaic.version = 11 : i64} {
  func.func @_mlp_conv_kernel(%arg0: i32, %arg1: memref<128x2xf32, #tpu.memory_space<vmem>>, %arg2: memref<16x64xf32, #tpu.memory_space<vmem>>, %arg3: memref<2x32xf32, #tpu.memory_space<vmem>>, %arg4: memref<1x32xf32, #tpu.memory_space<vmem>>, %arg5: memref<32x32xf32, #tpu.memory_space<vmem>>, %arg6: memref<1x32xf32, #tpu.memory_space<vmem>>, %arg7: memref<32x64xf32, #tpu.memory_space<vmem>>, %arg8: memref<1x64xf32, #tpu.memory_space<vmem>>, %arg9: memref<64x128xf32, #tpu.memory_space<vmem>>, %arg10: memref<8x128xf32, #tpu.memory_space<vmem>>) attributes {dimension_semantics = [#tpu.dimension_semantics<parallel>], iteration_bounds = array<i64: 2>, scalar_prefetch = 0 : i64, scratch_operands = 0 : i64, tpu.core_type = #tpu.core_type<tc>, window_params = [{transform_indices = @transform_0, window_bounds = array<i64: 128, 2>}, {pipeline_mode = #tpu.pipeline_mode<synchronous>, transform_indices = @transform_1, window_bounds = array<i64: 16, 64>}, {pipeline_mode = #tpu.pipeline_mode<synchronous>, transform_indices = @transform_2, window_bounds = array<i64: 2, 32>}, {pipeline_mode = #tpu.pipeline_mode<synchronous>, transform_indices = @transform_3, window_bounds = array<i64: 1, 32>}, {pipeline_mode = #tpu.pipeline_mode<synchronous>, transform_indices = @transform_4, window_bounds = array<i64: 32, 32>}, {pipeline_mode = #tpu.pipeline_mode<synchronous>, transform_indices = @transform_5, window_bounds = array<i64: 1, 32>}, {pipeline_mode = #tpu.pipeline_mode<synchronous>, transform_indices = @transform_6, window_bounds = array<i64: 32, 64>}, {pipeline_mode = #tpu.pipeline_mode<synchronous>, transform_indices = @transform_7, window_bounds = array<i64: 1, 64>}, {pipeline_mode = #tpu.pipeline_mode<synchronous>, transform_indices = @transform_8, window_bounds = array<i64: 64, 128>}, {transform_indices = @transform_9, window_bounds = array<i64: 8, 128>}]} {
    %c0 = arith.constant 0 : index
    %c0_0 = arith.constant 0 : index
    %0 = vector.load %arg1[%c0, %c0_0] : memref<128x2xf32, #tpu.memory_space<vmem>>, vector<128x1xf32>
    %c0_1 = arith.constant 0 : index
    %c0_2 = arith.constant 0 : index
    %1 = vector.load %arg3[%c0_1, %c0_2] : memref<2x32xf32, #tpu.memory_space<vmem>>, vector<1x32xf32>
    %2 = vector.broadcast %0 : vector<128x1xf32> to vector<128x32xf32>
    %3 = vector.broadcast %1 : vector<1x32xf32> to vector<128x32xf32>
    %4 = arith.mulf %2, %3 : vector<128x32xf32>
    %c0_3 = arith.constant 0 : index
    %c1 = arith.constant 1 : index
    %5 = vector.load %arg1[%c0_3, %c1] : memref<128x2xf32, #tpu.memory_space<vmem>>, vector<128x1xf32>
    %c1_4 = arith.constant 1 : index
    %c0_5 = arith.constant 0 : index
    %6 = vector.load %arg3[%c1_4, %c0_5] : memref<2x32xf32, #tpu.memory_space<vmem>>, vector<1x32xf32>
    %7 = vector.broadcast %5 : vector<128x1xf32> to vector<128x32xf32>
    %8 = vector.broadcast %6 : vector<1x32xf32> to vector<128x32xf32>
    %9 = arith.mulf %7, %8 : vector<128x32xf32>
    %10 = arith.addf %4, %9 : vector<128x32xf32>
    %c0_6 = arith.constant 0 : index
    %c0_7 = arith.constant 0 : index
    %11 = vector.load %arg4[%c0_6, %c0_7] : memref<1x32xf32, #tpu.memory_space<vmem>>, vector<1x32xf32>
    %12 = vector.broadcast %11 : vector<1x32xf32> to vector<128x32xf32>
    %13 = arith.addf %10, %12 : vector<128x32xf32>
    %cst = arith.constant 0.000000e+00 : f32
    %14 = vector.broadcast %cst : f32 to vector<128x32xf32>
    %15 = arith.maximumf %13, %14 : vector<128x32xf32>
    %c0_8 = arith.constant 0 : index
    %c0_9 = arith.constant 0 : index
    %16 = vector.load %arg5[%c0_8, %c0_9] : memref<32x32xf32, #tpu.memory_space<vmem>>, vector<32x32xf32>
    %cst_10 = arith.constant dense<0.000000e+00> : vector<128x32xf32>
    %17 = tpu.matmul %15, %16, %cst_10 {dimension_numbers = #tpu.dot_dimension_numbers<[1], [0], [0], [1], [0, 0, 1, 1], [], []>} : vector<128x32xf32>, vector<32x32xf32>, vector<128x32xf32> -> vector<128x32xf32>
    %c0_11 = arith.constant 0 : index
    %c0_12 = arith.constant 0 : index
    %18 = vector.load %arg6[%c0_11, %c0_12] : memref<1x32xf32, #tpu.memory_space<vmem>>, vector<1x32xf32>
    %19 = vector.broadcast %18 : vector<1x32xf32> to vector<128x32xf32>
    %20 = arith.addf %17, %19 : vector<128x32xf32>
    %cst_13 = arith.constant 0.000000e+00 : f32
    %21 = vector.broadcast %cst_13 : f32 to vector<128x32xf32>
    %22 = arith.maximumf %20, %21 : vector<128x32xf32>
    %c0_14 = arith.constant 0 : index
    %c0_15 = arith.constant 0 : index
    %23 = vector.load %arg7[%c0_14, %c0_15] : memref<32x64xf32, #tpu.memory_space<vmem>>, vector<32x64xf32>
    %cst_16 = arith.constant dense<0.000000e+00> : vector<128x64xf32>
    %24 = tpu.matmul %22, %23, %cst_16 {dimension_numbers = #tpu.dot_dimension_numbers<[1], [0], [0], [1], [0, 0, 1, 1], [], []>} : vector<128x32xf32>, vector<32x64xf32>, vector<128x64xf32> -> vector<128x64xf32>
    %c0_17 = arith.constant 0 : index
    %c0_18 = arith.constant 0 : index
    %25 = vector.load %arg8[%c0_17, %c0_18] : memref<1x64xf32, #tpu.memory_space<vmem>>, vector<1x64xf32>
    %26 = vector.broadcast %25 : vector<1x64xf32> to vector<128x64xf32>
    %27 = arith.addf %24, %26 : vector<128x64xf32>
    %28 = vector.shape_cast %27 : vector<128x64xf32> to vector<8x16x64xf32>
    %c0_19 = arith.constant 0 : index
    %c0_20 = arith.constant 0 : index
    %29 = vector.load %arg2[%c0_19, %c0_20] : memref<16x64xf32, #tpu.memory_space<vmem>>, vector<16x64xf32>
    %30 = vector.shape_cast %29 : vector<16x64xf32> to vector<1x16x64xf32>
    %31 = vector.broadcast %30 : vector<1x16x64xf32> to vector<8x16x64xf32>
    %32 = arith.mulf %28, %31 : vector<8x16x64xf32>
    %cst_21 = arith.constant dense<0.000000e+00> : vector<8x64xf32>
    %33 = vector.multi_reduction <add>, %32, %cst_21 [1] : vector<8x16x64xf32> to vector<8x64xf32>
    %c0_22 = arith.constant 0 : index
    %c0_23 = arith.constant 0 : index
    %34 = vector.load %arg9[%c0_22, %c0_23] : memref<64x128xf32, #tpu.memory_space<vmem>>, vector<64x128xf32>
    %cst_24 = arith.constant dense<0.000000e+00> : vector<8x128xf32>
    %35 = tpu.matmul %33, %34, %cst_24 {dimension_numbers = #tpu.dot_dimension_numbers<[1], [0], [0], [1], [0, 0, 1, 1], [], []>} : vector<8x64xf32>, vector<64x128xf32>, vector<8x128xf32> -> vector<8x128xf32>
    %c0_25 = arith.constant 0 : index
    %c0_26 = arith.constant 0 : index
    %36 = vector.load %arg10[%c0_25, %c0_26] : memref<8x128xf32, #tpu.memory_space<vmem>>, vector<8x128xf32>
    tpu.vector_store %arg10[%c0_25, %c0_26], %35 {strides = array<i32>} : memref<8x128xf32, #tpu.memory_space<vmem>>, vector<8x128xf32>,
    return
  }
  func.func @transform_0(%arg0: i32) -> (i32, i32) {
    %c0_i32 = arith.constant 0 : i32
    %c0_i32_0 = arith.constant 0 : i32
    return %arg0, %c0_i32 : i32, i32
  }
  func.func @transform_1(%arg0: i32) -> (i32, i32) {
    %c0_i32 = arith.constant 0 : i32
    %c0_i32_0 = arith.constant 0 : i32
    %c0_i32_1 = arith.constant 0 : i32
    return %c0_i32, %c0_i32_0 : i32, i32
  }
  func.func @transform_2(%arg0: i32) -> (i32, i32) {
    %c0_i32 = arith.constant 0 : i32
    %c0_i32_0 = arith.constant 0 : i32
    %c0_i32_1 = arith.constant 0 : i32
    return %c0_i32, %c0_i32_0 : i32, i32
  }
  func.func @transform_3(%arg0: i32) -> (i32, i32) {
    %c0_i32 = arith.constant 0 : i32
    %c0_i32_0 = arith.constant 0 : i32
    %c0_i32_1 = arith.constant 0 : i32
    return %c0_i32, %c0_i32_0 : i32, i32
  }
  func.func @transform_4(%arg0: i32) -> (i32, i32) {
    %c0_i32 = arith.constant 0 : i32
    %c0_i32_0 = arith.constant 0 : i32
    %c0_i32_1 = arith.constant 0 : i32
    return %c0_i32, %c0_i32_0 : i32, i32
  }
  func.func @transform_5(%arg0: i32) -> (i32, i32) {
    %c0_i32 = arith.constant 0 : i32
    %c0_i32_0 = arith.constant 0 : i32
    %c0_i32_1 = arith.constant 0 : i32
    return %c0_i32, %c0_i32_0 : i32, i32
  }
  func.func @transform_6(%arg0: i32) -> (i32, i32) {
    %c0_i32 = arith.constant 0 : i32
    %c0_i32_0 = arith.constant 0 : i32
    %c0_i32_1 = arith.constant 0 : i32
    return %c0_i32, %c0_i32_0 : i32, i32
  }
  func.func @transform_7(%arg0: i32) -> (i32, i32) {
    %c0_i32 = arith.constant 0 : i32
    %c0_i32_0 = arith.constant 0 : i32
    %c0_i32_1 = arith.constant 0 : i32
    return %c0_i32, %c0_i32_0 : i32, i32
  }
  func.func @transform_8(%arg0: i32) -> (i32, i32) {
    %c0_i32 = arith.constant 0 : i32
    %c0_i32_0 = arith.constant 0 : i32
    %c0_i32_1 = arith.constant 0 : i32
    return %c0_i32, %c0_i32_0 : i32, i32
  }
  func.func @transform_9(%arg0: i32) -> (i32, i32) {
    %c0_i32 = arith.constant 0 : i32
    %c0_i32_0 = arith.constant 0 : i32
    return %arg0, %c0_i32 : i32, i32
  }
}

</mosaic_0001>

<llo_original>
// kernel: tpu_custom_call.1
$region0: #{tpu_custom_call.1}
  #allocation0 [shape = 'u32[]', space=smem, size = 0x4, offset = 0x4, fixed_abs, tag = 'smem constant byte address 0x4 - core index']
  #allocation1 [shape = 'u32[144,128]{1,0:T(1,128)}', space=vmem, size = 0x12000, scoped, tag = 'internal scratch']
  %s0 = inlined_call_operand.vmem [shape: f32[256,2], index: 0, kind: input, shape index: {}]
  %s1 = inlined_call_operand.vmem [shape: f32[16,64], index: 1, kind: input, shape index: {}]
  %s2 = inlined_call_operand.vmem [shape: f32[2,32], index: 2, kind: input, shape index: {}]
  %s3 = inlined_call_operand.vmem [shape: f32[1,32], index: 3, kind: input, shape index: {}]
  %s4 = inlined_call_operand.vmem [shape: f32[32,32], index: 4, kind: input, shape index: {}]
  %s5 = inlined_call_operand.vmem [shape: f32[1,32], index: 5, kind: input, shape index: {}]
  %s6 = inlined_call_operand.vmem [shape: f32[32,64], index: 6, kind: input, shape index: {}]
  %s7 = inlined_call_operand.vmem [shape: f32[1,64], index: 7, kind: input, shape index: {}]
  %s8 = inlined_call_operand.vmem [shape: f32[64,128], index: 8, kind: input, shape index: {}]
  %s9 = inlined_call_operand.hbm [shape: f32[16,128], index: 9, kind: output, shape index: {}]
  %s10 = sld [smem:[#allocation0]]
  $region69: #{tpu_custom_call.1} parent=0
    _
  %s12 = ssub.s32 1, %s10
  %s13 = scalar_select 0, %s12, %s10
  $region1: #{tpu_custom_call.1} parent=0
    #allocation2 [shape = 'u8[8192]{0}', space=vmem, size = 0x2000, scoped, tag = 'output window, operand 0']
    #allocation3 [shape = 's32[2]{0}', space=sflag, size = 0x8, scoped, tag = 'scoped memory for tpu_custom_call.1']
    %14 = vsyncpa [#allocation3], 0
    %s15 = scalar_lea.sflag [#allocation3], 1
    %16 = vsyncpa %s15, 0
    loop: start=0, step=1, limit=4
    $region2: #{tpu_custom_call.1} parent=1 // loop_pre_header
      _
    $region3: #{tpu_custom_call.1} parent=1 // loop_header
      %s18 = sphi 0, %s22
      %p19 = scmp.ge.s32.totalorder %s18, 4
      %s28 = sphi 0, %s30
      %s31 = sphi 0, %s28
      %s32 = sphi 0, %s31
      %s48 = sphi 0, %s32
      %s52 = sphi 0, %s52
      %s54 = sphi 0, %s52
      %s55 = sphi 0, %s54
      %s69 = sphi 0, %s55
      %s73 = sphi 0, %s73
      %s75 = sphi 0, %s73
      %s76 = sphi 0, %s75
      %s90 = sphi 0, %s76
      %s94 = sphi 0, %s94
      %s96 = sphi 0, %s94
      %s97 = sphi 0, %s96
      %s111 = sphi 0, %s97
      %s115 = sphi 0, %s115
      %s117 = sphi 0, %s115
      %s118 = sphi 0, %s117
      %s132 = sphi 0, %s118
      %s136 = sphi 0, %s136
      %s138 = sphi 0, %s136
      %s139 = sphi 0, %s138
      %s153 = sphi 0, %s139
      %s157 = sphi 0, %s157
      %s159 = sphi 0, %s157
      %s160 = sphi 0, %s159
      %s174 = sphi 0, %s160
      %s178 = sphi 0, %s178
      %s180 = sphi 0, %s178
      %s181 = sphi 0, %s180
      %s195 = sphi 0, %s181
      %s199 = sphi 0, %s199
      %s201 = sphi 0, %s199
      %s202 = sphi 0, %s201
      %s216 = sphi 0, %s202
      %s222 = sphi 0, %s224
      %s225 = sphi 0, %s222
      %s226 = sphi 0, %s225
      %s242 = sphi 0, %s226
    $region4: #{tpu_custom_call.1} parent=1 // loop_header_branch
      %21 = sbr.rel (%p19) target = $region8
    $region5: #{tpu_custom_call.1} parent=1 // loop_body
      %s23 = ssub.s32 %s18, 1
      %s24 = ssub.s32 %s18, 2
      %s25 = sadd.s32 %s18, 1
      %s26 = ssub.s32 %s18, %s25
      %p27 = scmp.eq.s32.totalorder %s26, 0
      %s29 = sadd.s32 %s28, 1
      %s30 = scalar_select %p27, %s28, %s29
      %p33 = pneg %p27
      %p34 = scmp.eq.s32.totalorder %s18, 1
      %p35 = por %p33, %p34
      %p36 = scmp.ne.s32.totalorder %s28, %s31
      %p37 = scmp.eq.s32.totalorder %s18, 0
      %p38 = por %p36, %p37
      %p39 = scmp.ne.s32.totalorder %s28, %s31
      %p40 = scmp.eq.s32.totalorder %s23, 1
      %p41 = por %p39, %p40
      %p42 = scmp.ne.s32.totalorder %s31, %s32
      %p43 = scmp.eq.s32.totalorder %s23, 0
      %p44 = por %p42, %p43
      %p45 = scmp.ne.s32.totalorder %s31, %s32
      %p46 = scmp.eq.s32.totalorder %s24, 1
      %p47 = por %p45, %p46
      %p49 = scmp.ne.s32.totalorder %s32, %s48
      %p50 = scmp.eq.s32.totalorder %s24, 0
      %p51 = por %p49, %p50
      %s53 = sadd.s32 %s52, 1
      %p56 = scmp.eq.s32.totalorder %s18, 1
      %p57 = scmp.ne.s32.totalorder %s52, %s54
      %p58 = scmp.eq.s32.totalorder %s18, 0
      %p59 = por %p57, %p58
      %p60 = scmp.ne.s32.totalorder %s52, %s54
      %p61 = scmp.eq.s32.totalorder %s23, 1
      %p62 = por %p60, %p61
      %p63 = scmp.ne.s32.totalorder %s54, %s55
      %p64 = scmp.eq.s32.totalorder %s23, 0
      %p65 = por %p63, %p64
      %p66 = scmp.ne.s32.totalorder %s54, %s55
      %p67 = scmp.eq.s32.totalorder %s24, 1
      %p68 = por %p66, %p67
      %p70 = scmp.ne.s32.totalorder %s55, %s69
      %p71 = scmp.eq.s32.totalorder %s24, 0
      %p72 = por %p70, %p71
      %s74 = sadd.s32 %s73, 1
      %p77 = scmp.eq.s32.totalorder %s18, 1
      %p78 = scmp.ne.s32.totalorder %s73, %s75
      %p79 = scmp.eq.s32.totalorder %s18, 0
      %p80 = por %p78, %p79
      %p81 = scmp.ne.s32.totalorder %s73, %s75
      %p82 = scmp.eq.s32.totalorder %s23, 1
      %p83 = por %p81, %p82
      %p84 = scmp.ne.s32.totalorder %s75, %s76
      %p85 = scmp.eq.s32.totalorder %s23, 0
      %p86 = por %p84, %p85
      %p87 = scmp.ne.s32.totalorder %s75, %s76
      %p88 = scmp.eq.s32.totalorder %s24, 1
      %p89 = por %p87, %p88
      %p91 = scmp.ne.s32.totalorder %s76, %s90
      %p92 = scmp.eq.s32.totalorder %s24, 0
      %p93 = por %p91, %p92
      %s95 = sadd.s32 %s94, 1
      %p98 = scmp.eq.s32.totalorder %s18, 1
      %p99 = scmp.ne.s32.totalorder %s94, %s96
      %p100 = scmp.eq.s32.totalorder %s18, 0
      %p101 = por %p99, %p100
      %p102 = scmp.ne.s32.totalorder %s94, %s96
      %p103 = scmp.eq.s32.totalorder %s23, 1
      %p104 = por %p102, %p103
      %p105 = scmp.ne.s32.totalorder %s96, %s97
      %p106 = scmp.eq.s32.totalorder %s23, 0
      %p107 = por %p105, %p106
      %p108 = scmp.ne.s32.totalorder %s96, %s97
      %p109 = scmp.eq.s32.totalorder %s24, 1
      %p110 = por %p108, %p109
      %p112 = scmp.ne.s32.totalorder %s97, %s111
      %p113 = scmp.eq.s32.totalorder %s24, 0
      %p114 = por %p112, %p113
      %s116 = sadd.s32 %s115, 1
      %p119 = scmp.eq.s32.totalorder %s18, 1
      %p120 = scmp.ne.s32.totalorder %s115, %s117
      %p121 = scmp.eq.s32.totalorder %s18, 0
      %p122 = por %p120, %p121
      %p123 = scmp.ne.s32.totalorder %s115, %s117
      %p124 = scmp.eq.s32.totalorder %s23, 1
      %p125 = por %p123, %p124
      %p126 = scmp.ne.s32.totalorder %s117, %s118
      %p127 = scmp.eq.s32.totalorder %s23, 0
      %p128 = por %p126, %p127
      %p129 = scmp.ne.s32.totalorder %s117, %s118
      %p130 = scmp.eq.s32.totalorder %s24, 1
      %p131 = por %p129, %p130
      %p133 = scmp.ne.s32.totalorder %s118, %s132
      %p134 = scmp.eq.s32.totalorder %s24, 0
      %p135 = por %p133, %p134
      %s137 = sadd.s32 %s136, 1
      %p140 = scmp.eq.s32.totalorder %s18, 1
      %p141 = scmp.ne.s32.totalorder %s136, %s138
      %p142 = scmp.eq.s32.totalorder %s18, 0
      %p143 = por %p141, %p142
      %p144 = scmp.ne.s32.totalorder %s136, %s138
      %p145 = scmp.eq.s32.totalorder %s23, 1
      %p146 = por %p144, %p145
      %p147 = scmp.ne.s32.totalorder %s138, %s139
      %p148 = scmp.eq.s32.totalorder %s23, 0
      %p149 = por %p147, %p148
      %p150 = scmp.ne.s32.totalorder %s138, %s139
      %p151 = scmp.eq.s32.totalorder %s24, 1
      %p152 = por %p150, %p151
      %p154 = scmp.ne.s32.totalorder %s139, %s153
      %p155 = scmp.eq.s32.totalorder %s24, 0
      %p156 = por %p154, %p155
      %s158 = sadd.s32 %s157, 1
      %p161 = scmp.eq.s32.totalorder %s18, 1
      %p162 = scmp.ne.s32.totalorder %s157, %s159
      %p163 = scmp.eq.s32.totalorder %s18, 0
      %p164 = por %p162, %p163
      %p165 = scmp.ne.s32.totalorder %s157, %s159
      %p166 = scmp.eq.s32.totalorder %s23, 1
      %p167 = por %p165, %p166
      %p168 = scmp.ne.s32.totalorder %s159, %s160
      %p169 = scmp.eq.s32.totalorder %s23, 0
      %p170 = por %p168, %p169
      %p171 = scmp.ne.s32.totalorder %s159, %s160
      %p172 = scmp.eq.s32.totalorder %s24, 1
      %p173 = por %p171, %p172
      %p175 = scmp.ne.s32.totalorder %s160, %s174
      %p176 = scmp.eq.s32.totalorder %s24, 0
      %p177 = por %p175, %p176
      %s179 = sadd.s32 %s178, 1
      %p182 = scmp.eq.s32.totalorder %s18, 1
      %p183 = scmp.ne.s32.totalorder %s178, %s180
      %p184 = scmp.eq.s32.totalorder %s18, 0
      %p185 = por %p183, %p184
      %p186 = scmp.ne.s32.totalorder %s178, %s180
      %p187 = scmp.eq.s32.totalorder %s23, 1
      %p188 = por %p186, %p187
      %p189 = scmp.ne.s32.totalorder %s180, %s181
      %p190 = scmp.eq.s32.totalorder %s23, 0
      %p191 = por %p189, %p190
      %p192 = scmp.ne.s32.totalorder %s180, %s181
      %p193 = scmp.eq.s32.totalorder %s24, 1
      %p194 = por %p192, %p193
      %p196 = scmp.ne.s32.totalorder %s181, %s195
      %p197 = scmp.eq.s32.totalorder %s24, 0
      %p198 = por %p196, %p197
      %s200 = sadd.s32 %s199, 1
      %p203 = scmp.eq.s32.totalorder %s18, 1
      %p204 = scmp.ne.s32.totalorder %s199, %s201
      %p205 = scmp.eq.s32.totalorder %s18, 0
      %p206 = por %p204, %p205
      %p207 = scmp.ne.s32.totalorder %s199, %s201
      %p208 = scmp.eq.s32.totalorder %s23, 1
      %p209 = por %p207, %p208
      %p210 = scmp.ne.s32.totalorder %s201, %s202
      %p211 = scmp.eq.s32.totalorder %s23, 0
      %p212 = por %p210, %p211
      %p213 = scmp.ne.s32.totalorder %s201, %s202
      %p214 = scmp.eq.s32.totalorder %s24, 1
      %p215 = por %p213, %p214
      %p217 = scmp.ne.s32.totalorder %s202, %s216
      %p218 = scmp.eq.s32.totalorder %s24, 0
      %p219 = por %p217, %p218
      %s220 = ssub.s32 %s18, %s25
      %p221 = scmp.eq.s32.totalorder %s220, 0
      %s223 = sadd.s32 %s222, 1
      %s224 = scalar_select %p221, %s222, %s223
      %p227 = pneg %p221
      %p228 = scmp.eq.s32.totalorder %s18, 1
      %p229 = por %p227, %p228
      %p230 = scmp.ne.s32.totalorder %s222, %s225
      %p231 = scmp.eq.s32.totalorder %s18, 0
      %p232 = por %p230, %p231
      %p233 = scmp.ne.s32.totalorder %s222, %s225
      %p234 = scmp.eq.s32.totalorder %s23, 1
      %p235 = por %p233, %p234
      %p236 = scmp.ne.s32.totalorder %s225, %s226
      %p237 = scmp.eq.s32.totalorder %s23, 0
      %p238 = por %p236, %p237
      %p239 = scmp.ne.s32.totalorder %s225, %s226
      %p240 = scmp.eq.s32.totalorder %s24, 1
      %p241 = por %p239, %p240
      %p243 = scmp.ne.s32.totalorder %s226, %s242
      %p244 = scmp.eq.s32.totalorder %s24, 0
      %p245 = por %p243, %p244
      %p246 = scmp.le.s32.totalorder 1, %s18
      %p247 = scmp.lt.s32.totalorder %s18, 3
      %p248 = pnand %p246, %p247
      %p249 = pneg %p248
      // Predicated region
      $region9: #{tpu_custom_call.1} parent=5 // pred_check
        _
      $region10: #{tpu_custom_call.1} parent=5 // pred_check_branch
        %251 = sbr.rel (%p248) target = $region12
      $region11: #{tpu_custom_call.1} parent=5 // pred_region
        %s252 = ssub.s32 %s18, 1
        // Predicated region
        $region13: #{tpu_custom_call.1} parent=11 // pred_check
          %p253 = pneg %p65
        $region14: #{tpu_custom_call.1} parent=11 // pred_check_branch
          %255 = sbr.rel (%p253) target = $region16
        $region15: #{tpu_custom_call.1} parent=11 // pred_region
          _
        $region16: #{tpu_custom_call.1} parent=11 // pred_fallthru
          _
        // Predicated region
        $region17: #{tpu_custom_call.1} parent=11 // pred_check
          %p256 = pneg %p86
        $region18: #{tpu_custom_call.1} parent=11 // pred_check_branch
          %258 = sbr.rel (%p256) target = $region20
        $region19: #{tpu_custom_call.1} parent=11 // pred_region
          _
        $region20: #{tpu_custom_call.1} parent=11 // pred_fallthru
          _
        // Predicated region
        $region21: #{tpu_custom_call.1} parent=11 // pred_check
          %p259 = pneg %p107
        $region22: #{tpu_custom_call.1} parent=11 // pred_check_branch
          %261 = sbr.rel (%p259) target = $region24
        $region23: #{tpu_custom_call.1} parent=11 // pred_region
          _
        $region24: #{tpu_custom_call.1} parent=11 // pred_fallthru
          _
        // Predicated region
        $region25: #{tpu_custom_call.1} parent=11 // pred_check
          %p262 = pneg %p128
        $region26: #{tpu_custom_call.1} parent=11 // pred_check_branch
          %264 = sbr.rel (%p262) target = $region28
        $region27: #{tpu_custom_call.1} parent=11 // pred_region
          _
        $region28: #{tpu_custom_call.1} parent=11 // pred_fallthru
          _
        // Predicated region
        $region29: #{tpu_custom_call.1} parent=11 // pred_check
          %p265 = pneg %p149
        $region30: #{tpu_custom_call.1} parent=11 // pred_check_branch
          %267 = sbr.rel (%p265) target = $region32
        $region31: #{tpu_custom_call.1} parent=11 // pred_region
          _
        $region32: #{tpu_custom_call.1} parent=11 // pred_fallthru
          _
        // Predicated region
        $region33: #{tpu_custom_call.1} parent=11 // pred_check
          %p268 = pneg %p170
        $region34: #{tpu_custom_call.1} parent=11 // pred_check_branch
          %270 = sbr.rel (%p268) target = $region36
        $region35: #{tpu_custom_call.1} parent=11 // pred_region
          _
        $region36: #{tpu_custom_call.1} parent=11 // pred_fallthru
          _
        // Predicated region
        $region37: #{tpu_custom_call.1} parent=11 // pred_check
          %p271 = pneg %p191
        $region38: #{tpu_custom_call.1} parent=11 // pred_check_branch
          %273 = sbr.rel (%p271) target = $region40
        $region39: #{tpu_custom_call.1} parent=11 // pred_region
          _
        $region40: #{tpu_custom_call.1} parent=11 // pred_fallthru
          _
        // Predicated region
        $region41: #{tpu_custom_call.1} parent=11 // pred_check
          %p274 = pneg %p212
        $region42: #{tpu_custom_call.1} parent=11 // pred_check_branch
          %276 = sbr.rel (%p274) target = $region44
        $region43: #{tpu_custom_call.1} parent=11 // pred_region
          _
        $region44: #{tpu_custom_call.1} parent=11 // pred_fallthru
          _
      $region12: #{tpu_custom_call.1} parent=5 // pred_fallthru
        _
      %p277 = scmp.lt.s32.totalorder %s18, 2
      // Predicated region
      $region45: #{tpu_custom_call.1} parent=5 // pred_check
        %p278 = pneg %p277
      $region46: #{tpu_custom_call.1} parent=5 // pred_check_branch
        %280 = sbr.rel (%p278) target = $region48
      $region47: #{tpu_custom_call.1} parent=5 // pred_region
        // Predicated region
        $region49: #{tpu_custom_call.1} parent=47 // pred_check
          %p281 = pneg %p38
        $region50: #{tpu_custom_call.1} parent=47 // pred_check_branch
          %283 = sbr.rel (%p281) target = $region52
        $region51: #{tpu_custom_call.1} parent=47 // pred_region
          %s284 = smul.u32 16, %s18
          %p285 = scmp.lt.s32.totalorder %s284, 31
          %s286 = scalar_select %p285, %s284, 31
          %s287 = smul.addr %s286, 8
          %s288 = scalar_lea.vmem %s0, %s287
          %s289 = smul.u32 16, %s18
        $region52: #{tpu_custom_call.1} parent=47 // pred_fallthru
          _
      $region48: #{tpu_custom_call.1} parent=5 // pred_fallthru
        _
      %p290 = scmp.le.s32.totalorder 1, %s18
      %p291 = scmp.lt.s32.totalorder %s18, 3
      %p292 = pnand %p290, %p291
      %p293 = pneg %p292
      // Predicated region
      $region53: #{tpu_custom_call.1} parent=5 // pred_check
        _
      $region54: #{tpu_custom_call.1} parent=5 // pred_check_branch
        %295 = sbr.rel (%p292) target = $region56
      $region55: #{tpu_custom_call.1} parent=5 // pred_region
        %s296 = ssub.s32 %s18, 1
        %s297 = smul.u32 16, %s23
        %p298 = scmp.lt.s32.totalorder %s297, 31
        %s299 = scalar_select %p298, %s297, 31
        %s300 = smul.addr %s299, 8
        %s301 = scalar_lea.vmem %s0, %s300
        %p302 = pneg %p44
        %p303 = pneg %p41
        %p304 = pneg %p65
        %p305 = pneg %p62
        %p306 = pneg %p86
        %p307 = pneg %p83
        %p308 = pneg %p107
        %p309 = pneg %p104
        %p310 = pneg %p128
        %p311 = pneg %p125
        %p312 = pneg %p149
        %p313 = pneg %p146
        %p314 = pneg %p170
        %p315 = pneg %p167
        %p316 = pneg %p191
        %p317 = pneg %p188
        %p318 = pneg %p212
        %p319 = pneg %p209
        %p320 = pneg %p238
        %p321 = pneg %p235
        %s322 = sand.u32 %s225, 1
        %s323 = scalar_lea.sflag [#allocation3], %s322
        %s324 = sand.u32 %s225, 1
        %s325 = smul.addr %s324, 8
        %s326 = scalar_lea.vmem [#allocation2], %s325
        %s327 = smul.u32 16, %s23
        %p328 = scmp.lt.s32.totalorder %s327, 31
        %s329 = scalar_select %p328, %s327, 31
        %s330 = smul.addr %s329, 8
        %s331 = scalar_lea.vmem %s0, %s330
        %s332 = smul.u32 16, %s23
        %v333 = vld [vmem:[%s331] sm:$0xff]
        %v334 = vld [vmem:[%s331 + $0x8] sm:$0xff]
        %v335 = vld [vmem:[%s331 + $0x10] sm:$0xff]
        %v336 = vld [vmem:[%s331 + $0x18] sm:$0xff]
        %v337 = vld [vmem:[%s331 + $0x20] sm:$0xff]
        %v338 = vld [vmem:[%s331 + $0x28] sm:$0xff]
        %v339 = vld [vmem:[%s331 + $0x30] sm:$0xff]
        %v340 = vld [vmem:[%s331 + $0x38] sm:$0xff]
        %v341 = vld [vmem:[%s331 + $0x40] sm:$0xff]
        %v342 = vld [vmem:[%s331 + $0x48] sm:$0xff]
        %v343 = vld [vmem:[%s331 + $0x50] sm:$0xff]
        %v344 = vld [vmem:[%s331 + $0x58] sm:$0xff]
        %v345 = vld [vmem:[%s331 + $0x60] sm:$0xff]
        %v346 = vld [vmem:[%s331 + $0x68] sm:$0xff]
        %v347 = vld [vmem:[%s331 + $0x70] sm:$0xff]
        %v348 = vld [vmem:[%s331 + $0x78] sm:$0xff]
        %v349 = vld [vmem:[%s2] sm:$0x1]
        %351 = vset.pattern.permute.xlu0 0
        %352 = vperm.xlu0 %351, %v333
        %v353 = vpop.permute.xlu0 %352
        %356 = vset.pattern.permute.xlu0 0
        %357 = vperm.xlu0 %356, %v334
        %v358 = vpop.permute.xlu0 %357
        %361 = vset.pattern.permute.xlu0 0
        %362 = vperm.xlu0 %361, %v335
        %v363 = vpop.permute.xlu0 %362
        %366 = vset.pattern.permute.xlu0 0
        %367 = vperm.xlu0 %366, %v336
        %v368 = vpop.permute.xlu0 %367
        %371 = vset.pattern.permute.xlu0 0
        %372 = vperm.xlu0 %371, %v337
        %v373 = vpop.permute.xlu0 %372
        %376 = vset.pattern.permute.xlu0 0
        %377 = vperm.xlu0 %376, %v338
        %v378 = vpop.permute.xlu0 %377
        %381 = vset.pattern.permute.xlu0 0
        %382 = vperm.xlu0 %381, %v339
        %v383 = vpop.permute.xlu0 %382
        %386 = vset.pattern.permute.xlu0 0
        %387 = vperm.xlu0 %386, %v340
        %v388 = vpop.permute.xlu0 %387
        %391 = vset.pattern.permute.xlu0 0
        %392 = vperm.xlu0 %391, %v341
        %v393 = vpop.permute.xlu0 %392
        %396 = vset.pattern.permute.xlu0 0
        %397 = vperm.xlu0 %396, %v342
        %v398 = vpop.permute.xlu0 %397
        %401 = vset.pattern.permute.xlu0 0
        %402 = vperm.xlu0 %401, %v343
        %v403 = vpop.permute.xlu0 %402
        %406 = vset.pattern.permute.xlu0 0
        %407 = vperm.xlu0 %406, %v344
        %v408 = vpop.permute.xlu0 %407
        %411 = vset.pattern.permute.xlu0 0
        %412 = vperm.xlu0 %411, %v345
        %v413 = vpop.permute.xlu0 %412
        %416 = vset.pattern.permute.xlu0 0
        %417 = vperm.xlu0 %416, %v346
        %v418 = vpop.permute.xlu0 %417
        %421 = vset.pattern.permute.xlu0 0
        %422 = vperm.xlu0 %421, %v347
        %v423 = vpop.permute.xlu0 %422
        %426 = vset.pattern.permute.xlu0 0
        %427 = vperm.xlu0 %426, %v348
        %v428 = vpop.permute.xlu0 %427
        %v430 = vlaneseq
        %v431 = vshrl.u32 %v430, 7
        %v432 = vsub.s32 0, %v431
        %v433 = vrot.slane %v349, %v432
        %v434 = vmul.f32 %v353, %v433
        %v435 = vmul.f32 %v358, %v433
        %v436 = vmul.f32 %v363, %v433
        %v437 = vmul.f32 %v368, %v433
        %v438 = vmul.f32 %v373, %v433
        %v439 = vmul.f32 %v378, %v433
        %v440 = vmul.f32 %v383, %v433
        %v441 = vmul.f32 %v388, %v433
        %v442 = vmul.f32 %v393, %v433
        %v443 = vmul.f32 %v398, %v433
        %v444 = vmul.f32 %v403, %v433
        %v445 = vmul.f32 %v408, %v433
        %v446 = vmul.f32 %v413, %v433
        %v447 = vmul.f32 %v418, %v433
        %v448 = vmul.f32 %v423, %v433
        %v449 = vmul.f32 %v428, %v433
        %v450 = vld [vmem:[%s2 + $0x1] sm:$0x1]
        %451 = vset.pattern.permute.xlu0 1
        %452 = vperm.xlu0 %451, %v333
        %v453 = vpop.permute.xlu0 %452
        %455 = vset.pattern.permute.xlu0 1
        %456 = vperm.xlu0 %455, %v334
        %v457 = vpop.permute.xlu0 %456
        %459 = vset.pattern.permute.xlu0 1
        %460 = vperm.xlu0 %459, %v335
        %v461 = vpop.permute.xlu0 %460
        %463 = vset.pattern.permute.xlu0 1
        %464 = vperm.xlu0 %463, %v336
        %v465 = vpop.permute.xlu0 %464
        %467 = vset.pattern.permute.xlu0 1
        %468 = vperm.xlu0 %467, %v337
        %v469 = vpop.permute.xlu0 %468
        %471 = vset.pattern.permute.xlu0 1
        %472 = vperm.xlu0 %471, %v338
        %v473 = vpop.permute.xlu0 %472
        %475 = vset.pattern.permute.xlu0 1
        %476 = vperm.xlu0 %475, %v339
        %v477 = vpop.permute.xlu0 %476
        %479 = vset.pattern.permute.xlu0 1
        %480 = vperm.xlu0 %479, %v340
        %v481 = vpop.permute.xlu0 %480
        %483 = vset.pattern.permute.xlu0 1
        %484 = vperm.xlu0 %483, %v341
        %v485 = vpop.permute.xlu0 %484
        %487 = vset.pattern.permute.xlu0 1
        %488 = vperm.xlu0 %487, %v342
        %v489 = vpop.permute.xlu0 %488
        %491 = vset.pattern.permute.xlu0 1
        %492 = vperm.xlu0 %491, %v343
        %v493 = vpop.permute.xlu0 %492
        %495 = vset.pattern.permute.xlu0 1
        %496 = vperm.xlu0 %495, %v344
        %v497 = vpop.permute.xlu0 %496
        %499 = vset.pattern.permute.xlu0 1
        %500 = vperm.xlu0 %499, %v345
        %v501 = vpop.permute.xlu0 %500
        %503 = vset.pattern.permute.xlu0 1
        %504 = vperm.xlu0 %503, %v346
        %v505 = vpop.permute.xlu0 %504
        %507 = vset.pattern.permute.xlu0 1
        %508 = vperm.xlu0 %507, %v347
        %v509 = vpop.permute.xlu0 %508
        %511 = vset.pattern.permute.xlu0 1
        %512 = vperm.xlu0 %511, %v348
        %v513 = vpop.permute.xlu0 %512
        %v515 = vlaneseq
        %v516 = vshrl.u32 %v515, 7
        %v517 = vsub.s32 0, %v516
        %v518 = vrot.slane %v450, %v517
        %v519 = vmul.f32 %v453, %v518
        %v520 = vmul.f32 %v457, %v518
        %v521 = vmul.f32 %v461, %v518
        %v522 = vmul.f32 %v465, %v518
        %v523 = vmul.f32 %v469, %v518
        %v524 = vmul.f32 %v473, %v518
        %v525 = vmul.f32 %v477, %v518
        %v526 = vmul.f32 %v481, %v518
        %v527 = vmul.f32 %v485, %v518
        %v528 = vmul.f32 %v489, %v518
        %v529 = vmul.f32 %v493, %v518
        %v530 = vmul.f32 %v497, %v518
        %v531 = vmul.f32 %v501, %v518
        %v532 = vmul.f32 %v505, %v518
        %v533 = vmul.f32 %v509, %v518
        %v534 = vmul.f32 %v513, %v518
        %v535 = vadd.f32 %v434, %v519
        %v536 = vadd.f32 %v435, %v520
        %v537 = vadd.f32 %v436, %v521
        %v538 = vadd.f32 %v437, %v522
        %v539 = vadd.f32 %v438, %v523
        %v540 = vadd.f32 %v439, %v524
        %v541 = vadd.f32 %v440, %v525
        %v542 = vadd.f32 %v441, %v526
        %v543 = vadd.f32 %v442, %v527
        %v544 = vadd.f32 %v443, %v528
        %v545 = vadd.f32 %v444, %v529
        %v546 = vadd.f32 %v445, %v530
        %v547 = vadd.f32 %v446, %v531
        %v548 = vadd.f32 %v447, %v532
        %v549 = vadd.f32 %v448, %v533
        %v550 = vadd.f32 %v449, %v534
        %v551 = vld [vmem:[%s3] sm:$0x1]
        %v553 = vlaneseq
        %v554 = vshrl.u32 %v553, 7
        %v555 = vsub.s32 0, %v554
        %v556 = vrot.slane %v551, %v555
        %v558 = vadd.f32 %v535, %v556
        %v559 = vadd.f32 %v536, %v556
        %v560 = vadd.f32 %v537, %v556
        %v561 = vadd.f32 %v538, %v556
        %v562 = vadd.f32 %v539, %v556
        %v563 = vadd.f32 %v540, %v556
        %v564 = vadd.f32 %v541, %v556
        %v565 = vadd.f32 %v542, %v556
        %v566 = vadd.f32 %v543, %v556
        %v567 = vadd.f32 %v544, %v556
        %v568 = vadd.f32 %v545, %v556
        %v569 = vadd.f32 %v546, %v556
        %v570 = vadd.f32 %v547, %v556
        %v571 = vadd.f32 %v548, %v556
        %v572 = vadd.f32 %v549, %v556
        %v573 = vadd.f32 %v550, %v556
        %v574 = vmax.f32 %v558, 0.0
        %v575 = vmax.f32 %v559, 0.0
        %v576 = vmax.f32 %v560, 0.0
        %v577 = vmax.f32 %v561, 0.0
        %v578 = vmax.f32 %v562, 0.0
        %v579 = vmax.f32 %v563, 0.0
        %v580 = vmax.f32 %v564, 0.0
        %v581 = vmax.f32 %v565, 0.0
        %v582 = vmax.f32 %v566, 0.0
        %v583 = vmax.f32 %v567, 0.0
        %v584 = vmax.f32 %v568, 0.0
        %v585 = vmax.f32 %v569, 0.0
        %v586 = vmax.f32 %v570, 0.0
        %v587 = vmax.f32 %v571, 0.0
        %v588 = vmax.f32 %v572, 0.0
        %v589 = vmax.f32 %v573, 0.0
        %v590 = vld [vmem:[%s4] sm:$0xff]
        %v591 = vld [vmem:[%s4 + $0x8] sm:$0xff]
        %v592 = vld [vmem:[%s4 + $0x10] sm:$0xff]
        %v593 = vld [vmem:[%s4 + $0x18] sm:$0xff]
        %v594 = vld [vmem:[%s5] sm:$0x1]
        %v596 = vlaneseq
        %v597 = vshrl.u32 %v596, 7
        %v598 = vsub.s32 0, %v597
        %v599 = vrot.slane %v594, %v598
        %vm601 = vcmask 261120
        %v603 = vsel %vm601, %v574, 0
        %v606 = vsel %vm601, %v575, 0
        %v609 = vsel %vm601, %v576, 0
        %v612 = vsel %vm601, %v577, 0
        %v615 = vsel %vm601, %v578, 0
        %v618 = vsel %vm601, %v579, 0
        %v621 = vsel %vm601, %v580, 0
        %v624 = vsel %vm601, %v581, 0
        %v627 = vsel %vm601, %v582, 0
        %v630 = vsel %vm601, %v583, 0
        %v633 = vsel %vm601, %v584, 0
        %v636 = vsel %vm601, %v585, 0
        %v639 = vsel %vm601, %v586, 0
        %v642 = vsel %vm601, %v587, 0
        %v645 = vsel %vm601, %v588, 0
        %v648 = vsel %vm601, %v589, 0
        %650 = vmatprep.subr.mxu0 0.0
        %651 = vmatpush1.msra.mxu0 0.0
        %652 = vmatprep.subr.mxu0 0.0
        %653 = vmatpush1.msra.mxu0 0.0
        %654 = vmatprep.subr.mxu0 0.0
        %655 = vmatpush1.msra.mxu0 0.0
        %656 = vmatprep.subr.mxu0 0.0
        %657 = vmatpush1.msra.mxu0 0.0
        %658 = vmatprep.subr.mxu0 0.0
        %659 = vmatpush1.msra.mxu0 0.0
        %660 = vmatprep.subr.mxu0 0.0
        %661 = vmatpush1.msra.mxu0 0.0
        %662 = vmatprep.subr.mxu0 0.0
        %663 = vmatpush1.msra.mxu0 0.0
        %664 = vmatprep.subr.mxu0 0.0
        %665 = vmatpush1.msra.mxu0 0.0
        %666 = vmatprep.subr.mxu0 0.0
        %667 = vmatpush1.msra.mxu0 0.0
        %668 = vmatprep.subr.mxu0 0.0
        %669 = vmatpush1.msra.mxu0 0.0
        %670 = vmatprep.subr.mxu0 0.0
        %671 = vmatpush1.msra.mxu0 0.0
        %672 = vmatprep.subr.mxu0 0.0
        %673 = vmatpush1.msra.mxu0 0.0
        %674 = vmatprep.subr.mxu0 0.0
        %675 = vmatpush1.msra.mxu0 %v593
        %676 = vmatprep.subr.mxu0 0.0
        %677 = vmatpush1.msra.mxu0 %v592
        %678 = vmatprep.subr.mxu0 0.0
        %679 = vmatpush1.msra.mxu0 %v591
        %680 = vmatprep.subr.mxu0 0.0
        %681 = vmatpush1.msra.mxu0 %v590
        %682 = vmatprep.subr.mxu0 0.0
        %683 = vmatpush2.msra.mxu0 0.0
        %684 = vmatprep.subr.mxu0 0.0
        %685 = vmatpush2.msra.mxu0 0.0
        %686 = vmatprep.subr.mxu0 0.0
        %687 = vmatpush2.msra.mxu0 0.0
        %688 = vmatprep.subr.mxu0 0.0
        %689 = vmatpush2.msra.mxu0 0.0
        %690 = vmatprep.subr.mxu0 0.0
        %691 = vmatpush2.msra.mxu0 0.0
        %692 = vmatprep.subr.mxu0 0.0
        %693 = vmatpush2.msra.mxu0 0.0
        %694 = vmatprep.subr.mxu0 0.0
        %695 = vmatpush2.msra.mxu0 0.0
        %696 = vmatprep.subr.mxu0 0.0
        %697 = vmatpush2.msra.mxu0 0.0
        %698 = vmatprep.subr.mxu0 0.0
        %699 = vmatpush2.msra.mxu0 0.0
        %700 = vmatprep.subr.mxu0 0.0
        %701 = vmatpush2.msra.mxu0 0.0
        %702 = vmatprep.subr.mxu0 0.0
        %703 = vmatpush2.msra.mxu0 0.0
        %704 = vmatprep.subr.mxu0 0.0
        %705 = vmatpush2.msra.mxu0 0.0
        %706 = vmatprep.subr.mxu0 0.0
        %707 = vmatpush2.msra.mxu0 0.0
        %708 = vmatprep.subr.mxu0 0.0
        %709 = vmatpush2.msra.mxu0 0.0
        %710 = vmatprep.subr.mxu0 0.0
        %711 = vmatpush2.msra.mxu0 0.0
        %712 = vmatprep.subr.mxu0 0.0
        %713 = vmatpush2.msra.mxu0 0.0
        %714 = vmatprep.mubr.f32.mxu0 0.0
        %715 = vmatmul.mubr.f32.gmra.mxu0 %v603
        %v716 = vpop.f32.mrf.mxu0
        %v717 = vadd.f32 %v599, %v716
        %v718 = vpop.f32.mrf.mxu0
        %719 = vmatprep.mubr.f32.mxu0 0.0
        %720 = vmatmul.mubr.f32.gmra.mxu0 %v606
        %v721 = vpop.f32.mrf.mxu0
        %v722 = vadd.f32 %v599, %v721
        %v723 = vpop.f32.mrf.mxu0
        %724 = vmatprep.mubr.f32.mxu0 0.0
        %725 = vmatmul.mubr.f32.gmra.mxu0 %v609
        %v726 = vpop.f32.mrf.mxu0
        %v727 = vadd.f32 %v599, %v726
        %v728 = vpop.f32.mrf.mxu0
        %729 = vmatprep.mubr.f32.mxu0 0.0
        %730 = vmatmul.mubr.f32.gmra.mxu0 %v612
        %v731 = vpop.f32.mrf.mxu0
        %v732 = vadd.f32 %v599, %v731
        %v733 = vpop.f32.mrf.mxu0
        %734 = vmatprep.mubr.f32.mxu0 0.0
        %735 = vmatmul.mubr.f32.gmra.mxu0 %v615
        %v736 = vpop.f32.mrf.mxu0
        %v737 = vadd.f32 %v599, %v736
        %v738 = vpop.f32.mrf.mxu0
        %739 = vmatprep.mubr.f32.mxu0 0.0
        %740 = vmatmul.mubr.f32.gmra.mxu0 %v618
        %v741 = vpop.f32.mrf.mxu0
        %v742 = vadd.f32 %v599, %v741
        %v743 = vpop.f32.mrf.mxu0
        %744 = vmatprep.mubr.f32.mxu0 0.0
        %745 = vmatmul.mubr.f32.gmra.mxu0 %v621
        %v746 = vpop.f32.mrf.mxu0
        %v747 = vadd.f32 %v599, %v746
        %v748 = vpop.f32.mrf.mxu0
        %749 = vmatprep.mubr.f32.mxu0 0.0
        %750 = vmatmul.mubr.f32.gmra.mxu0 %v624
        %v751 = vpop.f32.mrf.mxu0
        %v752 = vadd.f32 %v599, %v751
        %v753 = vpop.f32.mrf.mxu0
        %754 = vmatprep.mubr.f32.mxu0 0.0
        %755 = vmatmul.mubr.f32.gmra.mxu0 %v627
        %v756 = vpop.f32.mrf.mxu0
        %v757 = vadd.f32 %v599, %v756
        %v758 = vpop.f32.mrf.mxu0
        %759 = vmatprep.mubr.f32.mxu0 0.0
        %760 = vmatmul.mubr.f32.gmra.mxu0 %v630
        %v761 = vpop.f32.mrf.mxu0
        %v762 = vadd.f32 %v599, %v761
        %v763 = vpop.f32.mrf.mxu0
        %764 = vmatprep.mubr.f32.mxu0 0.0
        %765 = vmatmul.mubr.f32.gmra.mxu0 %v633
        %v766 = vpop.f32.mrf.mxu0
        %v767 = vadd.f32 %v599, %v766
        %v768 = vpop.f32.mrf.mxu0
        %769 = vmatprep.mubr.f32.mxu0 0.0
        %770 = vmatmul.mubr.f32.gmra.mxu0 %v636
        %v771 = vpop.f32.mrf.mxu0
        %v772 = vadd.f32 %v599, %v771
        %v773 = vpop.f32.mrf.mxu0
        %774 = vmatprep.mubr.f32.mxu0 0.0
        %775 = vmatmul.mubr.f32.gmra.mxu0 %v639
        %v776 = vpop.f32.mrf.mxu0
        %v777 = vadd.f32 %v599, %v776
        %v778 = vpop.f32.mrf.mxu0
        %779 = vmatprep.mubr.f32.mxu0 0.0
        %780 = vmatmul.mubr.f32.gmra.mxu0 %v642
        %v781 = vpop.f32.mrf.mxu0
        %v782 = vadd.f32 %v599, %v781
        %v783 = vpop.f32.mrf.mxu0
        %784 = vmatprep.mubr.f32.mxu0 0.0
        %785 = vmatmul.mubr.f32.gmra.mxu0 %v645
        %v786 = vpop.f32.mrf.mxu0
        %v787 = vadd.f32 %v599, %v786
        %v788 = vpop.f32.mrf.mxu0
        %789 = vmatprep.mubr.f32.mxu0 0.0
        %790 = vmatmul.mubr.f32.gmra.mxu0 %v648
        %v791 = vpop.f32.mrf.mxu0
        %v792 = vadd.f32 %v599, %v791
        %v793 = vpop.f32.mrf.mxu0
        %794 = vdwg.mxu0
        %v795 = vmax.f32 %v717, 0.0
        %v796 = vmax.f32 %v722, 0.0
        %v797 = vmax.f32 %v727, 0.0
        %v798 = vmax.f32 %v732, 0.0
        %v799 = vmax.f32 %v737, 0.0
        %v800 = vmax.f32 %v742, 0.0
        %v801 = vmax.f32 %v747, 0.0
        %v802 = vmax.f32 %v752, 0.0
        %v803 = vmax.f32 %v757, 0.0
        %v804 = vmax.f32 %v762, 0.0
        %v805 = vmax.f32 %v767, 0.0
        %v806 = vmax.f32 %v772, 0.0
        %v807 = vmax.f32 %v777, 0.0
        %v808 = vmax.f32 %v782, 0.0
        %v809 = vmax.f32 %v787, 0.0
        %v810 = vmax.f32 %v792, 0.0
        %v811 = vld [vmem:[%s6] sm:$0xff]
        %v812 = vld [vmem:[%s6 + $0x8] sm:$0xff]
        %v813 = vld [vmem:[%s6 + $0x10] sm:$0xff]
        %v814 = vld [vmem:[%s6 + $0x18] sm:$0xff]
        %v815 = vld [vmem:[%s7] sm:$0x1]
        %v817 = vlaneseq
        %v818 = vshrl.u32 %v817, 7
        %v819 = vsub.s32 0, %v818
        %v820 = vrot.slane %v815, %v819
        %v823 = vsel %vm601, %v795, 0
        %v826 = vsel %vm601, %v796, 0
        %v829 = vsel %vm601, %v797, 0
        %v832 = vsel %vm601, %v798, 0
        %v835 = vsel %vm601, %v799, 0
        %v838 = vsel %vm601, %v800, 0
        %v841 = vsel %vm601, %v801, 0
        %v844 = vsel %vm601, %v802, 0
        %v847 = vsel %vm601, %v803, 0
        %v850 = vsel %vm601, %v804, 0
        %v853 = vsel %vm601, %v805, 0
        %v856 = vsel %vm601, %v806, 0
        %v859 = vsel %vm601, %v807, 0
        %v862 = vsel %vm601, %v808, 0
        %v865 = vsel %vm601, %v809, 0
        %v868 = vsel %vm601, %v810, 0
        %870 = vmatprep.subr.mxu0 0.0
        %871 = vmatpush1.msra.mxu0 0.0
        %872 = vmatprep.subr.mxu0 0.0
        %873 = vmatpush1.msra.mxu0 0.0
        %874 = vmatprep.subr.mxu0 0.0
        %875 = vmatpush1.msra.mxu0 0.0
        %876 = vmatprep.subr.mxu0 0.0
        %877 = vmatpush1.msra.mxu0 0.0
        %878 = vmatprep.subr.mxu0 0.0
        %879 = vmatpush1.msra.mxu0 0.0
        %880 = vmatprep.subr.mxu0 0.0
        %881 = vmatpush1.msra.mxu0 0.0
        %882 = vmatprep.subr.mxu0 0.0
        %883 = vmatpush1.msra.mxu0 0.0
        %884 = vmatprep.subr.mxu0 0.0
        %885 = vmatpush1.msra.mxu0 0.0
        %886 = vmatprep.subr.mxu0 0.0
        %887 = vmatpush1.msra.mxu0 0.0
        %888 = vmatprep.subr.mxu0 0.0
        %889 = vmatpush1.msra.mxu0 0.0
        %890 = vmatprep.subr.mxu0 0.0
        %891 = vmatpush1.msra.mxu0 0.0
        %892 = vmatprep.subr.mxu0 0.0
        %893 = vmatpush1.msra.mxu0 0.0
        %894 = vmatprep.subr.mxu0 0.0
        %895 = vmatpush1.msra.mxu0 %v814
        %896 = vmatprep.subr.mxu0 0.0
        %897 = vmatpush1.msra.mxu0 %v813
        %898 = vmatprep.subr.mxu0 0.0
        %899 = vmatpush1.msra.mxu0 %v812
        %900 = vmatprep.subr.mxu0 0.0
        %901 = vmatpush1.msra.mxu0 %v811
        %902 = vmatprep.subr.mxu0 0.0
        %903 = vmatpush2.msra.mxu0 0.0
        %904 = vmatprep.subr.mxu0 0.0
        %905 = vmatpush2.msra.mxu0 0.0
        %906 = vmatprep.subr.mxu0 0.0
        %907 = vmatpush2.msra.mxu0 0.0
        %908 = vmatprep.subr.mxu0 0.0
        %909 = vmatpush2.msra.mxu0 0.0
        %910 = vmatprep.subr.mxu0 0.0
        %911 = vmatpush2.msra.mxu0 0.0
        %912 = vmatprep.subr.mxu0 0.0
        %913 = vmatpush2.msra.mxu0 0.0
        %914 = vmatprep.subr.mxu0 0.0
        %915 = vmatpush2.msra.mxu0 0.0
        %916 = vmatprep.subr.mxu0 0.0
        %917 = vmatpush2.msra.mxu0 0.0
        %918 = vmatprep.subr.mxu0 0.0
        %919 = vmatpush2.msra.mxu0 0.0
        %920 = vmatprep.subr.mxu0 0.0
        %921 = vmatpush2.msra.mxu0 0.0
        %922 = vmatprep.subr.mxu0 0.0
        %923 = vmatpush2.msra.mxu0 0.0
        %924 = vmatprep.subr.mxu0 0.0
        %925 = vmatpush2.msra.mxu0 0.0
        %926 = vmatprep.subr.mxu0 0.0
        %927 = vmatpush2.msra.mxu0 0.0
        %928 = vmatprep.subr.mxu0 0.0
        %929 = vmatpush2.msra.mxu0 0.0
        %930 = vmatprep.subr.mxu0 0.0
        %931 = vmatpush2.msra.mxu0 0.0
        %932 = vmatprep.subr.mxu0 0.0
        %933 = vmatpush2.msra.mxu0 0.0
        %934 = vmatprep.mubr.f32.mxu0 0.0
        %935 = vmatmul.mubr.f32.gmra.mxu0 %v823
        %v936 = vpop.f32.mrf.mxu0
        %v937 = vadd.f32 %v820, %v936
        %v938 = vpop.f32.mrf.mxu0
        %939 = vmatprep.mubr.f32.mxu0 0.0
        %940 = vmatmul.mubr.f32.gmra.mxu0 %v826
        %v941 = vpop.f32.mrf.mxu0
        %v942 = vadd.f32 %v820, %v941
        %v943 = vpop.f32.mrf.mxu0
        %944 = vmatprep.mubr.f32.mxu0 0.0
        %945 = vmatmul.mubr.f32.gmra.mxu0 %v829
        %v946 = vpop.f32.mrf.mxu0
        %v947 = vadd.f32 %v820, %v946
        %v948 = vpop.f32.mrf.mxu0
        %949 = vmatprep.mubr.f32.mxu0 0.0
        %950 = vmatmul.mubr.f32.gmra.mxu0 %v832
        %v951 = vpop.f32.mrf.mxu0
        %v952 = vadd.f32 %v820, %v951
        %v953 = vpop.f32.mrf.mxu0
        %954 = vmatprep.mubr.f32.mxu0 0.0
        %955 = vmatmul.mubr.f32.gmra.mxu0 %v835
        %v956 = vpop.f32.mrf.mxu0
        %v957 = vadd.f32 %v820, %v956
        %v958 = vpop.f32.mrf.mxu0
        %959 = vmatprep.mubr.f32.mxu0 0.0
        %960 = vmatmul.mubr.f32.gmra.mxu0 %v838
        %v961 = vpop.f32.mrf.mxu0
        %v962 = vadd.f32 %v820, %v961
        %v963 = vpop.f32.mrf.mxu0
        %964 = vmatprep.mubr.f32.mxu0 0.0
        %965 = vmatmul.mubr.f32.gmra.mxu0 %v841
        %v966 = vpop.f32.mrf.mxu0
        %v967 = vadd.f32 %v820, %v966
        %v968 = vpop.f32.mrf.mxu0
        %969 = vmatprep.mubr.f32.mxu0 0.0
        %970 = vmatmul.mubr.f32.gmra.mxu0 %v844
        %v971 = vpop.f32.mrf.mxu0
        %v972 = vadd.f32 %v820, %v971
        %v973 = vpop.f32.mrf.mxu0
        %974 = vmatprep.mubr.f32.mxu0 0.0
        %975 = vmatmul.mubr.f32.gmra.mxu0 %v847
        %v976 = vpop.f32.mrf.mxu0
        %v977 = vadd.f32 %v820, %v976
        %v978 = vpop.f32.mrf.mxu0
        %979 = vmatprep.mubr.f32.mxu0 0.0
        %980 = vmatmul.mubr.f32.gmra.mxu0 %v850
        %v981 = vpop.f32.mrf.mxu0
        %v982 = vadd.f32 %v820, %v981
        %v983 = vpop.f32.mrf.mxu0
        %984 = vmatprep.mubr.f32.mxu0 0.0
        %985 = vmatmul.mubr.f32.gmra.mxu0 %v853
        %v986 = vpop.f32.mrf.mxu0
        %v987 = vadd.f32 %v820, %v986
        %v988 = vpop.f32.mrf.mxu0
        %989 = vmatprep.mubr.f32.mxu0 0.0
        %990 = vmatmul.mubr.f32.gmra.mxu0 %v856
        %v991 = vpop.f32.mrf.mxu0
        %v992 = vadd.f32 %v820, %v991
        %v993 = vpop.f32.mrf.mxu0
        %994 = vmatprep.mubr.f32.mxu0 0.0
        %995 = vmatmul.mubr.f32.gmra.mxu0 %v859
        %v996 = vpop.f32.mrf.mxu0
        %v997 = vadd.f32 %v820, %v996
        %v998 = vpop.f32.mrf.mxu0
        %999 = vmatprep.mubr.f32.mxu0 0.0
        %1000 = vmatmul.mubr.f32.gmra.mxu0 %v862
        %v1001 = vpop.f32.mrf.mxu0
        %v1002 = vadd.f32 %v820, %v1001
        %v1003 = vpop.f32.mrf.mxu0
        %1004 = vmatprep.mubr.f32.mxu0 0.0
        %1005 = vmatmul.mubr.f32.gmra.mxu0 %v865
        %v1006 = vpop.f32.mrf.mxu0
        %v1007 = vadd.f32 %v820, %v1006
        %v1008 = vpop.f32.mrf.mxu0
        %1009 = vmatprep.mubr.f32.mxu0 0.0
        %1010 = vmatmul.mubr.f32.gmra.mxu0 %v868
        %v1011 = vpop.f32.mrf.mxu0
        %v1012 = vadd.f32 %v820, %v1011
        %v1013 = vpop.f32.mrf.mxu0
        %1014 = vdwg.mxu0
        %v1015 = vld [vmem:[%s1] sm:$0xff]
        %v1016 = vld [vmem:[%s1 + $0x8] sm:$0xff]
        %v1017 = vmul.f32 %v937, %v1015
        %v1018 = vmul.f32 %v942, %v1016
        %v1019 = vmul.f32 %v947, %v1015
        %v1020 = vmul.f32 %v952, %v1016
        %v1021 = vmul.f32 %v957, %v1015
        %v1022 = vmul.f32 %v962, %v1016
        %v1023 = vmul.f32 %v967, %v1015
        %v1024 = vmul.f32 %v972, %v1016
        %v1025 = vmul.f32 %v977, %v1015
        %v1026 = vmul.f32 %v982, %v1016
        %v1027 = vmul.f32 %v987, %v1015
        %v1028 = vmul.f32 %v992, %v1016
        %v1029 = vmul.f32 %v997, %v1015
        %v1030 = vmul.f32 %v1002, %v1016
        %v1031 = vmul.f32 %v1007, %v1015
        %v1032 = vmul.f32 %v1012, %v1016
        %vm1033 = vcmask 523264
        %v1034 = vsel %vm1033, %v1017, 0.0
        %v1035 = vsel %vm1033, %v1018, 0.0
        %v1036 = vadd.f32 %v1034, %v1035
        %v1037 = vrot.slane %v1036, 4
        %v1038 = vadd.f32 %v1036, %v1037
        %v1039 = vrot.slane %v1038, 2
        %v1040 = vadd.f32 %v1038, %v1039
        %v1041 = vrot.slane %v1040, 1
        %v1042 = vadd.f32 %v1040, %v1041
        %v1043 = vsel %vm1033, %v1019, 0.0
        %v1044 = vsel %vm1033, %v1020, 0.0
        %v1045 = vadd.f32 %v1043, %v1044
        %v1046 = vrot.slane %v1045, 4
        %v1047 = vadd.f32 %v1045, %v1046
        %v1048 = vrot.slane %v1047, 2
        %v1049 = vadd.f32 %v1047, %v1048
        %v1050 = vrot.slane %v1049, 1
        %v1051 = vadd.f32 %v1049, %v1050
        %v1052 = vsel %vm1033, %v1021, 0.0
        %v1053 = vsel %vm1033, %v1022, 0.0
        %v1054 = vadd.f32 %v1052, %v1053
        %v1055 = vrot.slane %v1054, 4
        %v1056 = vadd.f32 %v1054, %v1055
        %v1057 = vrot.slane %v1056, 2
        %v1058 = vadd.f32 %v1056, %v1057
        %v1059 = vrot.slane %v1058, 1
        %v1060 = vadd.f32 %v1058, %v1059
        %v1061 = vsel %vm1033, %v1023, 0.0
        %v1062 = vsel %vm1033, %v1024, 0.0
        %v1063 = vadd.f32 %v1061, %v1062
        %v1064 = vrot.slane %v1063, 4
        %v1065 = vadd.f32 %v1063, %v1064
        %v1066 = vrot.slane %v1065, 2
        %v1067 = vadd.f32 %v1065, %v1066
        %v1068 = vrot.slane %v1067, 1
        %v1069 = vadd.f32 %v1067, %v1068
        %v1070 = vsel %vm1033, %v1025, 0.0
        %v1071 = vsel %vm1033, %v1026, 0.0
        %v1072 = vadd.f32 %v1070, %v1071
        %v1073 = vrot.slane %v1072, 4
        %v1074 = vadd.f32 %v1072, %v1073
        %v1075 = vrot.slane %v1074, 2
        %v1076 = vadd.f32 %v1074, %v1075
        %v1077 = vrot.slane %v1076, 1
        %v1078 = vadd.f32 %v1076, %v1077
        %v1079 = vsel %vm1033, %v1027, 0.0
        %v1080 = vsel %vm1033, %v1028, 0.0
        %v1081 = vadd.f32 %v1079, %v1080
        %v1082 = vrot.slane %v1081, 4
        %v1083 = vadd.f32 %v1081, %v1082
        %v1084 = vrot.slane %v1083, 2
        %v1085 = vadd.f32 %v1083, %v1084
        %v1086 = vrot.slane %v1085, 1
        %v1087 = vadd.f32 %v1085, %v1086
        %v1088 = vsel %vm1033, %v1029, 0.0
        %v1089 = vsel %vm1033, %v1030, 0.0
        %v1090 = vadd.f32 %v1088, %v1089
        %v1091 = vrot.slane %v1090, 4
        %v1092 = vadd.f32 %v1090, %v1091
        %v1093 = vrot.slane %v1092, 2
        %v1094 = vadd.f32 %v1092, %v1093
        %v1095 = vrot.slane %v1094, 1
        %v1096 = vadd.f32 %v1094, %v1095
        %v1097 = vsel %vm1033, %v1031, 0.0
        %v1098 = vsel %vm1033, %v1032, 0.0
        %v1099 = vadd.f32 %v1097, %v1098
        %v1100 = vrot.slane %v1099, 4
        %v1101 = vadd.f32 %v1099, %v1100
        %v1102 = vrot.slane %v1101, 2
        %v1103 = vadd.f32 %v1101, %v1102
        %v1104 = vrot.slane %v1103, 1
        %v1105 = vadd.f32 %v1103, %v1104
        %v1106 = vld [vmem:[%s8] sm:$0xff]
        %v1107 = vld [vmem:[%s8 + $0x8] sm:$0xff]
        %v1108 = vld [vmem:[%s8 + $0x10] sm:$0xff]
        %v1109 = vld [vmem:[%s8 + $0x18] sm:$0xff]
        %v1110 = vld [vmem:[%s8 + $0x20] sm:$0xff]
        %v1111 = vld [vmem:[%s8 + $0x28] sm:$0xff]
        %v1112 = vld [vmem:[%s8 + $0x30] sm:$0xff]
        %v1113 = vld [vmem:[%s8 + $0x38] sm:$0xff]
        %vm1122 = vcmask 1041409
        %v1123 = vsel %vm1122, %v1051, %v1042
        %vm1124 = vcmask 1042434
        %v1125 = vsel %vm1124, %v1060, %v1123
        %vm1126 = vcmask 1043459
        %v1127 = vsel %vm1126, %v1069, %v1125
        %vm1128 = vcmask 1044484
        %v1129 = vsel %vm1128, %v1078, %v1127
        %vm1130 = vcmask 1045509
        %v1131 = vsel %vm1130, %v1087, %v1129
        %vm1132 = vcmask 1046534
        %v1133 = vsel %vm1132, %v1096, %v1131
        %vm1134 = vcmask 1047559
        %v1135 = vsel %vm1134, %v1105, %v1133
        %v1136 = vsel %vm1033, %v1135, 0
        %1138 = vmatprep.subr.mxu0 0.0
        %1139 = vmatpush1.msra.mxu0 0.0
        %1140 = vmatprep.subr.mxu0 0.0
        %1141 = vmatpush1.msra.mxu0 0.0
        %1142 = vmatprep.subr.mxu0 0.0
        %1143 = vmatpush1.msra.mxu0 0.0
        %1144 = vmatprep.subr.mxu0 0.0
        %1145 = vmatpush1.msra.mxu0 0.0
        %1146 = vmatprep.subr.mxu0 0.0
        %1147 = vmatpush1.msra.mxu0 0.0
        %1148 = vmatprep.subr.mxu0 0.0
        %1149 = vmatpush1.msra.mxu0 0.0
        %1150 = vmatprep.subr.mxu0 0.0
        %1151 = vmatpush1.msra.mxu0 0.0
        %1152 = vmatprep.subr.mxu0 0.0
        %1153 = vmatpush1.msra.mxu0 0.0
        %1154 = vmatprep.subr.mxu0 0.0
        %1155 = vmatpush1.msra.mxu0 %v1113
        %1156 = vmatprep.subr.mxu0 0.0
        %1157 = vmatpush1.msra.mxu0 %v1112
        %1158 = vmatprep.subr.mxu0 0.0
        %1159 = vmatpush1.msra.mxu0 %v1111
        %1160 = vmatprep.subr.mxu0 0.0
        %1161 = vmatpush1.msra.mxu0 %v1110
        %1162 = vmatprep.subr.mxu0 0.0
        %1163 = vmatpush1.msra.mxu0 %v1109
        %1164 = vmatprep.subr.mxu0 0.0
        %1165 = vmatpush1.msra.mxu0 %v1108
        %1166 = vmatprep.subr.mxu0 0.0
        %1167 = vmatpush1.msra.mxu0 %v1107
        %1168 = vmatprep.subr.mxu0 0.0
        %1169 = vmatpush1.msra.mxu0 %v1106
        %1170 = vmatprep.subr.mxu0 0.0
        %1171 = vmatpush2.msra.mxu0 0.0
        %1172 = vmatprep.subr.mxu0 0.0
        %1173 = vmatpush2.msra.mxu0 0.0
        %1174 = vmatprep.subr.mxu0 0.0
        %1175 = vmatpush2.msra.mxu0 0.0
        %1176 = vmatprep.subr.mxu0 0.0
        %1177 = vmatpush2.msra.mxu0 0.0
        %1178 = vmatprep.subr.mxu0 0.0
        %1179 = vmatpush2.msra.mxu0 0.0
        %1180 = vmatprep.subr.mxu0 0.0
        %1181 = vmatpush2.msra.mxu0 0.0
        %1182 = vmatprep.subr.mxu0 0.0
        %1183 = vmatpush2.msra.mxu0 0.0
        %1184 = vmatprep.subr.mxu0 0.0
        %1185 = vmatpush2.msra.mxu0 0.0
        %1186 = vmatprep.subr.mxu0 0.0
        %1187 = vmatpush2.msra.mxu0 0.0
        %1188 = vmatprep.subr.mxu0 0.0
        %1189 = vmatpush2.msra.mxu0 0.0
        %1190 = vmatprep.subr.mxu0 0.0
        %1191 = vmatpush2.msra.mxu0 0.0
        %1192 = vmatprep.subr.mxu0 0.0
        %1193 = vmatpush2.msra.mxu0 0.0
        %1194 = vmatprep.subr.mxu0 0.0
        %1195 = vmatpush2.msra.mxu0 0.0
        %1196 = vmatprep.subr.mxu0 0.0
        %1197 = vmatpush2.msra.mxu0 0.0
        %1198 = vmatprep.subr.mxu0 0.0
        %1199 = vmatpush2.msra.mxu0 0.0
        %1200 = vmatprep.subr.mxu0 0.0
        %1201 = vmatpush2.msra.mxu0 0.0
        %1202 = vmatprep.mubr.f32.mxu0 0.0
        %1203 = vmatmul.mubr.f32.gmra.mxu0 %v1136
        %v1204 = vpop.f32.mrf.mxu0
        %v1205 = vadd.f32 0.0, %v1204
        %v1206 = vpop.f32.mrf.mxu0
        %1207 = vdwg.mxu0
        %1208 = vst [vmem:[%s326] sm:$0xff] %v1205
        %s1209 = sand.u32 %s225, 1
        %s1210 = scalar_lea.sflag [#allocation3], %s1209
        %s1211 = sand.u32 %s225, 1
        %s1212 = smul.addr %s1211, 8
        %s1213 = scalar_lea.vmem [#allocation2], %s1212
        // Predicated region
        $region57: #{tpu_custom_call.1} parent=55 // pred_check
          %p1214 = pneg %p235
        $region58: #{tpu_custom_call.1} parent=55 // pred_check_branch
          %1216 = sbr.rel (%p1214) target = $region60
        $region59: #{tpu_custom_call.1} parent=55 // pred_region
          %s1218 = ssub.s32 128, 128
          %1219 = vsyncadd %s1210, %s1218
          %s1220 = smul.addr %s23, 128
          %s1221 = scalar_lea.hbm %s9, %s1220
          %s1223 = sshll.u32 %s1213, 4
          %s1224 = int_to_ptr.vmem [resolvable:$true] %s1223
          %1226 = dma.vmem_to_hbm [thread:$0]  %s1224, 128, %s1221, %s1210
        $region60: #{tpu_custom_call.1} parent=55 // pred_fallthru
          _
      $region56: #{tpu_custom_call.1} parent=5 // pred_fallthru
        _
      %p1227 = scmp.le.s32.totalorder 2, %s18
      // Predicated region
      $region61: #{tpu_custom_call.1} parent=5 // pred_check
        %p1228 = pneg %p1227
      $region62: #{tpu_custom_call.1} parent=5 // pred_check_branch
        %1230 = sbr.rel (%p1228) target = $region64
      $region63: #{tpu_custom_call.1} parent=5 // pred_region
        %s1231 = ssub.s32 %s18, 2
        // Predicated region
        $region65: #{tpu_custom_call.1} parent=63 // pred_check
          %p1232 = pneg %p241
        $region66: #{tpu_custom_call.1} parent=63 // pred_check_branch
          %1234 = sbr.rel (%p1232) target = $region68
        $region67: #{tpu_custom_call.1} parent=63 // pred_region
          %s1235 = sand.u32 %s226, 1
          %s1236 = scalar_lea.sflag [#allocation3], %s1235
          %s1237 = sand.u32 %s226, 1
          %s1238 = smul.addr %s1237, 8
          %s1239 = scalar_lea.vmem [#allocation2], %s1238
          %1240 = dma.done %s1236, 128
        $region68: #{tpu_custom_call.1} parent=63 // pred_fallthru
          _
      $region64: #{tpu_custom_call.1} parent=5 // pred_fallthru
        _
    $region6: #{tpu_custom_call.1} parent=1 // loop_footer
      %s22 = sadd.s32 1, %s18
    $region7: #{tpu_custom_call.1} parent=1 // loop_footer_branch
      %17 = sbr.rel target = $region3
    $region8: #{tpu_custom_call.1} parent=1 // loop_exit
      _
    %1241 = vsyncpa [#allocation3], 1
    %s1242 = scalar_lea.sflag [#allocation3], 1
    %1243 = vsyncpa %s1242, 1

</llo_original>
